<compile_context>
chip_gen: v6e
topology: v6e:2x2x1
jax: 0.10.0
libtpu: 0.0.40
codegen_flags: <defaults>
</compile_context>

<pallas_src>
import functools

import jax
import jax.numpy as jnp
from jax.experimental import pallas as pl
from jax.experimental.pallas import tpu as pltpu


def _adaptive_gcn_kernel(x_ref, wt_ref, b_ref, o_ref, g1_ref, g2_ref):
    # x_ref : (1, N, D)   input sequence (transposed), full per batch
    # wt_ref: (2D, D)     conv weight, transposed
    # b_ref : (1, D)      conv bias
    # o_ref : (1, TI, D)  output i-tile
    # g1/g2 : (N, D)      per-batch projections, persist across the i-tile axis
    it = pl.program_id(1)
    _, ti, d = o_ref.shape

    # Recompute the two per-batch projections once per batch (first i-tile).
    @pl.when(it == 0)
    def _():
        xt = x_ref[0].astype(jnp.float32)                       # (N, D)
        wt = wt_ref[...].astype(jnp.float32)                    # (2D, D)
        g1_ref[...] = jnp.dot(xt, wt[:d, :],
                              preferred_element_type=jnp.float32)
        g2_ref[...] = jnp.dot(xt, wt[d:, :],
                              preferred_element_type=jnp.float32)

    i0 = pl.multiple_of(it * ti, ti)
    g1_all = g1_ref[...]                                        # (N, D)  j-term
    g1_i = g1_ref[pl.ds(i0, ti), :]                             # (TI, D) i-term
    g2_i = g2_ref[pl.ds(i0, ti), :]                             # (TI, D)

    base = g2_i - g1_i + b_ref[...].astype(jnp.float32)         # (TI, D)
    # pre[ii, j, h] = G1[j, h] + base[ii, h]  ==  1x1-conv(feature) + bias
    pre = g1_all[None, :, :] + base[:, None, :]                 # (TI, N, D)
    act = jnp.maximum(pre, 0.0)                                 # ReLU
    o_ref[0] = jnp.max(act, axis=1).astype(o_ref.dtype)         # max over j


def _pick_i_tile(n, cap=256):
    """Largest i-tile (divisor of n) that keeps the (TI, N, D) block bounded."""
    if n <= cap:
        return n
    best = None
    for t in range(8, cap + 1, 8):
        if n % t == 0:
            best = t
    return best if best is not None else n


@functools.partial(jax.jit, static_argnames=())
def adaptive_gcn(x, weight, bias):
    """x: (B, D, N), weight: (D, 2D), bias: (D,) -> out: (B, D, N)."""
    B, D, N = x.shape
    assert weight.shape == (D, 2 * D)
    assert bias.shape == (D,)

    xT = jnp.transpose(x, (0, 2, 1))          # (B, N, D): D on lanes
    wt = weight.T                             # (2D, D)
    b2 = bias.reshape(1, D)

    ti = _pick_i_tile(N)
    grid = (B, N // ti)

    cost = pl.CostEstimate(
        flops=int(B * (2 * 2 * N * (2 * D) * D + 3 * N * N * D)),
        transcendentals=0,
        bytes_accessed=int(4 * (2 * B * N * D + 2 * D * D + D)),
    )

    out_ndh = pl.pallas_call(
        _adaptive_gcn_kernel,
        out_shape=jax.ShapeDtypeStruct((B, N, D), x.dtype),
        grid_spec=pltpu.PrefetchScalarGridSpec(
            num_scalar_prefetch=0,
            grid=grid,
            in_specs=[
                pl.BlockSpec((1, N, D), lambda b, it: (b, 0, 0)),
                pl.BlockSpec((2 * D, D), lambda b, it: (0, 0)),
                pl.BlockSpec((1, D), lambda b, it: (0, 0)),
            ],
            out_specs=pl.BlockSpec((1, ti, D), lambda b, it: (b, it, 0)),
            scratch_shapes=[
                pltpu.VMEM((N, D), jnp.float32),
                pltpu.VMEM((N, D), jnp.float32),
            ],
        ),
        compiler_params=pltpu.CompilerParams(
            dimension_semantics=("parallel", "arbitrary")),
        cost_estimate=cost,
    )(xT, wt, b2)

    return jnp.transpose(out_ndh, (0, 2, 1))  # back to (B, D, N)


def _reference(x, weight, bias):
    """Pure-JAX reference mirroring the PyTorch module exactly."""
    B, D, N = x.shape
    xt = jnp.transpose(x, (0, 2, 1))                              # (B, N, D)
    tmp1 = jnp.broadcast_to(xt[:, None, :, :], (B, N, N, D))      # x[b, j, d]
    tmp2 = jnp.broadcast_to(xt[:, :, None, :], (B, N, N, D))      # x[b, i, d]
    feat = jnp.concatenate([tmp1 - tmp2, tmp2], axis=3)           # (B, N, N, 2D)
    feat = jnp.transpose(feat, (0, 3, 1, 2))                      # (B, 2D, N, N)
    pre = jnp.einsum('hc,bcij->bhij', weight, feat)
    pre = pre + bias[None, :, None, None]
    act = jnp.maximum(pre, 0.0)
    return jnp.max(act, axis=-1)                                  # (B, D, N)


if __name__ == "__main__":
    key = jax.random.PRNGKey(0)
    B, D, N = 2, 32, 16          # batch=2, hidden=32, num_points=16
    kx, kw, kb = jax.random.split(key, 3)
    x = jax.random.normal(kx, (B, D, N), dtype=jnp.float32)
    weight = jax.random.normal(kw, (D, 2 * D), dtype=jnp.float32) * 0.1
    bias = jax.random.normal(kb, (D,), dtype=jnp.float32) * 0.1

    out = adaptive_gcn(x, weight, bias)
    out = jax.block_until_ready(out)

    ref = _reference(x, weight, bias)
    assert out.shape == (B, D, N)
    assert jnp.allclose(out, ref, atol=1e-4, rtol=1e-4), "mismatch vs reference"

    print("KERNEL_OK")
</pallas_src>

<mosaic_0001>
module attributes {stable_mosaic.version = 11 : i64} {
  func.func @_adaptive_gcn_kernel(%arg0: i32, %arg1: i32, %arg2: memref<1x16x32xf32, #tpu.memory_space<vmem>>, %arg3: memref<64x32xf32, #tpu.memory_space<vmem>>, %arg4: memref<1x32xf32, #tpu.memory_space<vmem>>, %arg5: memref<1x16x32xf32, #tpu.memory_space<vmem>>, %arg6: memref<16x32xf32, #tpu.memory_space<vmem>>, %arg7: memref<16x32xf32, #tpu.memory_space<vmem>>) attributes {dimension_semantics = [#tpu.dimension_semantics<parallel>, #tpu.dimension_semantics<arbitrary>], iteration_bounds = array<i64: 2, 1>, scalar_prefetch = 0 : i64, scratch_operands = 2 : i64, tpu.core_type = #tpu.core_type<tc>, window_params = [{transform_indices = @transform_0, window_bounds = array<i64: 1, 16, 32>}, {pipeline_mode = #tpu.pipeline_mode<synchronous>, transform_indices = @transform_1, window_bounds = array<i64: 64, 32>}, {pipeline_mode = #tpu.pipeline_mode<synchronous>, transform_indices = @transform_2, window_bounds = array<i64: 1, 32>}, {transform_indices = @transform_3, window_bounds = array<i64: 1, 16, 32>}]} {
    %c0_i32 = arith.constant 0 : i32
    %0 = arith.cmpi eq, %arg1, %c0_i32 : i32
    %1 = arith.extui %0 : i1 to i32
    %c0_i32_0 = arith.constant 0 : i32
    %2 = arith.cmpi ne, %1, %c0_i32_0 : i32
    scf.if %2 {
      %c0_10 = arith.constant 0 : index
      %c0_11 = arith.constant 0 : index
      %c0_12 = arith.constant 0 : index
      %25 = vector.load %arg2[%c0_10, %c0_11, %c0_12] : memref<1x16x32xf32, #tpu.memory_space<vmem>>, vector<1x16x32xf32>
      %26 = vector.shape_cast %25 : vector<1x16x32xf32> to vector<16x32xf32>
      %c0_13 = arith.constant 0 : index
      %c0_14 = arith.constant 0 : index
      %27 = vector.load %arg3[%c0_13, %c0_14] : memref<64x32xf32, #tpu.memory_space<vmem>>, vector<64x32xf32>
      %28 = vector.extract_strided_slice %27 {offsets = [0, 0], sizes = [32, 32], strides = [1, 1]} : vector<64x32xf32> to vector<32x32xf32>
      %cst_15 = arith.constant dense<0.000000e+00> : vector<16x32xf32>
      %29 = tpu.matmul %26, %28, %cst_15 {dimension_numbers = #tpu.dot_dimension_numbers<[1], [0], [0], [1], [0, 0, 1, 1], [], []>} : vector<16x32xf32>, vector<32x32xf32>, vector<16x32xf32> -> vector<16x32xf32>
      %c0_16 = arith.constant 0 : index
      %c0_17 = arith.constant 0 : index
      %30 = vector.load %arg6[%c0_16, %c0_17] : memref<16x32xf32, #tpu.memory_space<vmem>>, vector<16x32xf32>
      tpu.vector_store %arg6[%c0_16, %c0_17], %29 {strides = array<i32>} : memref<16x32xf32, #tpu.memory_space<vmem>>, vector<16x32xf32>,
      %31 = vector.extract_strided_slice %27 {offsets = [32, 0], sizes = [32, 32], strides = [1, 1]} : vector<64x32xf32> to vector<32x32xf32>
      %cst_18 = arith.constant dense<0.000000e+00> : vector<16x32xf32>
      %32 = tpu.matmul %26, %31, %cst_18 {dimension_numbers = #tpu.dot_dimension_numbers<[1], [0], [0], [1], [0, 0, 1, 1], [], []>} : vector<16x32xf32>, vector<32x32xf32>, vector<16x32xf32> -> vector<16x32xf32>
      %c0_19 = arith.constant 0 : index
      %c0_20 = arith.constant 0 : index
      %33 = vector.load %arg7[%c0_19, %c0_20] : memref<16x32xf32, #tpu.memory_space<vmem>>, vector<16x32xf32>
      tpu.vector_store %arg7[%c0_19, %c0_20], %32 {strides = array<i32>} : memref<16x32xf32, #tpu.memory_space<vmem>>, vector<16x32xf32>,
    } else {
    }
    %c16_i32 = arith.constant 16 : i32
    %3 = arith.muli %arg1, %c16_i32 : i32
    %4 = tpu.assume_multiple %3, 16 : i32
    %c0 = arith.constant 0 : index
    %c0_1 = arith.constant 0 : index
    %5 = vector.load %arg6[%c0, %c0_1] : memref<16x32xf32, #tpu.memory_space<vmem>>, vector<16x32xf32>
    %6 = arith.index_cast %4 : i32 to index
    %c0_2 = arith.constant 0 : index
    %7 = vector.load %arg6[%6, %c0_2] : memref<16x32xf32, #tpu.memory_space<vmem>>, vector<16x32xf32>
    %8 = arith.index_cast %4 : i32 to index
    %c0_3 = arith.constant 0 : index
    %9 = vector.load %arg7[%8, %c0_3] : memref<16x32xf32, #tpu.memory_space<vmem>>, vector<16x32xf32>
    %10 = arith.subf %9, %7 : vector<16x32xf32>
    %c0_4 = arith.constant 0 : index
    %c0_5 = arith.constant 0 : index
    %11 = vector.load %arg4[%c0_4, %c0_5] : memref<1x32xf32, #tpu.memory_space<vmem>>, vector<1x32xf32>
    %12 = vector.broadcast %11 : vector<1x32xf32> to vector<16x32xf32>
    %13 = arith.addf %10, %12 : vector<16x32xf32>
    %14 = vector.shape_cast %5 : vector<16x32xf32> to vector<1x16x32xf32>
    %15 = vector.shape_cast %13 : vector<16x32xf32> to vector<16x1x32xf32>
    %16 = vector.broadcast %14 : vector<1x16x32xf32> to vector<16x16x32xf32>
    %17 = vector.broadcast %15 : vector<16x1x32xf32> to vector<16x16x32xf32>
    %18 = arith.addf %16, %17 : vector<16x16x32xf32>
    %cst = arith.constant 0.000000e+00 : f32
    %19 = vector.broadcast %cst : f32 to vector<16x16x32xf32>
    %20 = arith.maximumf %18, %19 : vector<16x16x32xf32>
    %cst_6 = arith.constant dense<0xFF800000> : vector<16x32xf32>
    %21 = vector.multi_reduction <maximumf>, %20, %cst_6 [1] : vector<16x16x32xf32> to vector<16x32xf32>
    %c0_7 = arith.constant 0 : index
    %c0_8 = arith.constant 0 : index
    %c0_9 = arith.constant 0 : index
    %22 = vector.load %arg5[%c0_7, %c0_8, %c0_9] : memref<1x16x32xf32, #tpu.memory_space<vmem>>, vector<1x16x32xf32>
    %23 = vector.shape_cast %22 : vector<1x16x32xf32> to vector<16x32xf32>
    %24 = vector.shape_cast %21 : vector<16x32xf32> to vector<1x16x32xf32>
    tpu.vector_store %arg5[%c0_7, %c0_8, %c0_9], %24 {strides = array<i32>} : memref<1x16x32xf32, #tpu.memory_space<vmem>>, vector<1x16x32xf32>,
    return
  }
  func.func @transform_0(%arg0: i32, %arg1: i32) -> (i32, i32, i32) {
    %c0_i32 = arith.constant 0 : i32
    %c0_i32_0 = arith.constant 0 : i32
    %c0_i32_1 = arith.constant 0 : i32
    return %arg0, %c0_i32, %c0_i32_0 : i32, i32, i32
  }
  func.func @transform_1(%arg0: i32, %arg1: i32) -> (i32, i32) {
    %c0_i32 = arith.constant 0 : i32
    %c0_i32_0 = arith.constant 0 : i32
    %c0_i32_1 = arith.constant 0 : i32
    return %c0_i32, %c0_i32_0 : i32, i32
  }
  func.func @transform_2(%arg0: i32, %arg1: i32) -> (i32, i32) {
    %c0_i32 = arith.constant 0 : i32
    %c0_i32_0 = arith.constant 0 : i32
    %c0_i32_1 = arith.constant 0 : i32
    return %c0_i32, %c0_i32_0 : i32, i32
  }
  func.func @transform_3(%arg0: i32, %arg1: i32) -> (i32, i32, i32) {
    %c0_i32 = arith.constant 0 : i32
    %c0_i32_0 = arith.constant 0 : i32
    return %arg0, %arg1, %c0_i32 : i32, i32, i32
  }
}

</mosaic_0001>

<llo_original>
// kernel: adaptive_gcn.1
$region0: #{adaptive_gcn.1}
  #allocation0 [shape = 'u32[]', space=smem, size = 0x4, offset = 0x4, fixed_abs, tag = 'smem constant byte address 0x4 - core index']
  #allocation1 [shape = 'u32[144,128]{1,0:T(1,128)}', space=vmem, size = 0x12000, scoped, tag = 'internal scratch']
  #allocation2 [shape = 'f32[16,32]{1,0:T(8,128)}', space=vmem, size = 0x2000, scoped, tag = 'scratch operand']
  #allocation3 [shape = 'f32[16,32]{1,0:T(8,128)}', space=vmem, size = 0x2000, scoped, tag = 'scratch operand']
  %s0 = inlined_call_operand.vmem [shape: f32[2,16,32], index: 0, kind: input, shape index: {}]
  %s1 = inlined_call_operand.vmem [shape: f32[64,32], index: 1, kind: input, shape index: {}]
  %s2 = inlined_call_operand.vmem [shape: f32[1,32], index: 2, kind: input, shape index: {}]
  %s3 = inlined_call_operand.hbm [shape: f32[2,16,32], index: 3, kind: output, shape index: {}]
  %s4 = sld [smem:[#allocation0]]
  $region49: #{adaptive_gcn.1} parent=0
    _
  %s6 = ssub.s32 1, %s4
  %s7 = scalar_select 0, %s6, %s4
  $region1: #{adaptive_gcn.1} parent=0
    #allocation4 [shape = 'u8[16384]{0}', space=vmem, size = 0x4000, scoped, tag = 'output window, operand 0']
    #allocation5 [shape = 's32[2]{0}', space=sflag, size = 0x8, scoped, tag = 'scoped memory for adaptive_gcn.1']
    %8 = vsyncpa [#allocation5], 0
    %s9 = scalar_lea.sflag [#allocation5], 1
    %10 = vsyncpa %s9, 0
    loop: start=0, step=1, limit=4
    $region2: #{adaptive_gcn.1} parent=1 // loop_pre_header
      _
    $region3: #{adaptive_gcn.1} parent=1 // loop_header
      %s12 = sphi 0, %s16
      %p13 = scmp.ge.s32.totalorder %s12, 4
      %s19 = sphi 0, %s31
      %s20 = sphi 0, %s27
      %s21 = sphi 0, %s19
      %s22 = sphi 0, %s20
      %s23 = sphi 0, %s21
      %s24 = sphi 0, %s22
      %s34 = sphi 0, %s36
      %s37 = sphi 0, %s34
      %s38 = sphi 0, %s37
      %s54 = sphi 0, %s38
      %s58 = sphi 0, %s58
      %s60 = sphi 0, %s58
      %s61 = sphi 0, %s60
      %s75 = sphi 0, %s61
      %s79 = sphi 0, %s79
      %s81 = sphi 0, %s79
      %s82 = sphi 0, %s81
      %s96 = sphi 0, %s82
      %s104 = sphi 0, %s106
      %s107 = sphi 0, %s104
      %s108 = sphi 0, %s107
      %s124 = sphi 0, %s108
    $region4: #{adaptive_gcn.1} parent=1 // loop_header_branch
      %15 = sbr.rel (%p13) target = $region8
    $region5: #{adaptive_gcn.1} parent=1 // loop_body
      %s17 = ssub.s32 %s12, 1
      %s18 = ssub.s32 %s12, 2
      %s25 = sadd.s32 1, %s20
      %p26 = scmp.ge.s32.totalorder %s25, 1
      %s27 = scalar_select %p26, 0, %s25
      %s28 = sadd.s32 1, %s19
      %s29 = scalar_select %p26, %s28, %s19
      %p30 = scmp.ge.s32.totalorder %s29, 2
      %s31 = scalar_select %p30, 0, %s29
      %s32 = ssub.s32 %s19, %s31
      %p33 = scmp.eq.s32.totalorder %s32, 0
      %s35 = sadd.s32 %s34, 1
      %s36 = scalar_select %p33, %s34, %s35
      %p39 = pneg %p33
      %p40 = scmp.eq.s32.totalorder %s12, 1
      %p41 = por %p39, %p40
      %p42 = scmp.ne.s32.totalorder %s34, %s37
      %p43 = scmp.eq.s32.totalorder %s12, 0
      %p44 = por %p42, %p43
      %p45 = scmp.ne.s32.totalorder %s34, %s37
      %p46 = scmp.eq.s32.totalorder %s17, 1
      %p47 = por %p45, %p46
      %p48 = scmp.ne.s32.totalorder %s37, %s38
      %p49 = scmp.eq.s32.totalorder %s17, 0
      %p50 = por %p48, %p49
      %p51 = scmp.ne.s32.totalorder %s37, %s38
      %p52 = scmp.eq.s32.totalorder %s18, 1
      %p53 = por %p51, %p52
      %p55 = scmp.ne.s32.totalorder %s38, %s54
      %p56 = scmp.eq.s32.totalorder %s18, 0
      %p57 = por %p55, %p56
      %s59 = sadd.s32 %s58, 1
      %p62 = scmp.eq.s32.totalorder %s12, 1
      %p63 = scmp.ne.s32.totalorder %s58, %s60
      %p64 = scmp.eq.s32.totalorder %s12, 0
      %p65 = por %p63, %p64
      %p66 = scmp.ne.s32.totalorder %s58, %s60
      %p67 = scmp.eq.s32.totalorder %s17, 1
      %p68 = por %p66, %p67
      %p69 = scmp.ne.s32.totalorder %s60, %s61
      %p70 = scmp.eq.s32.totalorder %s17, 0
      %p71 = por %p69, %p70
      %p72 = scmp.ne.s32.totalorder %s60, %s61
      %p73 = scmp.eq.s32.totalorder %s18, 1
      %p74 = por %p72, %p73
      %p76 = scmp.ne.s32.totalorder %s61, %s75
      %p77 = scmp.eq.s32.totalorder %s18, 0
      %p78 = por %p76, %p77
      %s80 = sadd.s32 %s79, 1
      %p83 = scmp.eq.s32.totalorder %s12, 1
      %p84 = scmp.ne.s32.totalorder %s79, %s81
      %p85 = scmp.eq.s32.totalorder %s12, 0
      %p86 = por %p84, %p85
      %p87 = scmp.ne.s32.totalorder %s79, %s81
      %p88 = scmp.eq.s32.totalorder %s17, 1
      %p89 = por %p87, %p88
      %p90 = scmp.ne.s32.totalorder %s81, %s82
      %p91 = scmp.eq.s32.totalorder %s17, 0
      %p92 = por %p90, %p91
      %p93 = scmp.ne.s32.totalorder %s81, %s82
      %p94 = scmp.eq.s32.totalorder %s18, 1
      %p95 = por %p93, %p94
      %p97 = scmp.ne.s32.totalorder %s82, %s96
      %p98 = scmp.eq.s32.totalorder %s18, 0
      %p99 = por %p97, %p98
      %s100 = ssub.s32 %s19, %s31
      %s101 = ssub.s32 %s20, %s27
      %s102 = sor.u32 %s100, %s101
      %p103 = scmp.eq.s32.totalorder %s102, 0
      %s105 = sadd.s32 %s104, 1
      %s106 = scalar_select %p103, %s104, %s105
      %p109 = pneg %p103
      %p110 = scmp.eq.s32.totalorder %s12, 1
      %p111 = por %p109, %p110
      %p112 = scmp.ne.s32.totalorder %s104, %s107
      %p113 = scmp.eq.s32.totalorder %s12, 0
      %p114 = por %p112, %p113
      %p115 = scmp.ne.s32.totalorder %s104, %s107
      %p116 = scmp.eq.s32.totalorder %s17, 1
      %p117 = por %p115, %p116
      %p118 = scmp.ne.s32.totalorder %s107, %s108
      %p119 = scmp.eq.s32.totalorder %s17, 0
      %p120 = por %p118, %p119
      %p121 = scmp.ne.s32.totalorder %s107, %s108
      %p122 = scmp.eq.s32.totalorder %s18, 1
      %p123 = por %p121, %p122
      %p125 = scmp.ne.s32.totalorder %s108, %s124
      %p126 = scmp.eq.s32.totalorder %s18, 0
      %p127 = por %p125, %p126
      %p128 = scmp.le.s32.totalorder 1, %s12
      %p129 = scmp.lt.s32.totalorder %s12, 3
      %p130 = pnand %p128, %p129
      %p131 = pneg %p130
      // Predicated region
      $region9: #{adaptive_gcn.1} parent=5 // pred_check
        _
      $region10: #{adaptive_gcn.1} parent=5 // pred_check_branch
        %133 = sbr.rel (%p130) target = $region12
      $region11: #{adaptive_gcn.1} parent=5 // pred_region
        %s134 = ssub.s32 %s12, 1
        // Predicated region
        $region13: #{adaptive_gcn.1} parent=11 // pred_check
          %p135 = pneg %p71
        $region14: #{adaptive_gcn.1} parent=11 // pred_check_branch
          %137 = sbr.rel (%p135) target = $region16
        $region15: #{adaptive_gcn.1} parent=11 // pred_region
          _
        $region16: #{adaptive_gcn.1} parent=11 // pred_fallthru
          _
        // Predicated region
        $region17: #{adaptive_gcn.1} parent=11 // pred_check
          %p138 = pneg %p92
        $region18: #{adaptive_gcn.1} parent=11 // pred_check_branch
          %140 = sbr.rel (%p138) target = $region20
        $region19: #{adaptive_gcn.1} parent=11 // pred_region
          _
        $region20: #{adaptive_gcn.1} parent=11 // pred_fallthru
          _
      $region12: #{adaptive_gcn.1} parent=5 // pred_fallthru
        _
      %p141 = scmp.lt.s32.totalorder %s12, 2
      // Predicated region
      $region21: #{adaptive_gcn.1} parent=5 // pred_check
        %p142 = pneg %p141
      $region22: #{adaptive_gcn.1} parent=5 // pred_check_branch
        %144 = sbr.rel (%p142) target = $region24
      $region23: #{adaptive_gcn.1} parent=5 // pred_region
        // Predicated region
        $region25: #{adaptive_gcn.1} parent=23 // pred_check
          %p145 = pneg %p44
        $region26: #{adaptive_gcn.1} parent=23 // pred_check_branch
          %147 = sbr.rel (%p145) target = $region28
        $region27: #{adaptive_gcn.1} parent=23 // pred_region
          %p148 = scmp.lt.s32.totalorder %s19, 1
          %s149 = scalar_select %p148, %s19, 1
          %s150 = smul.addr %s149, 2
          %s151 = smul.addr %s150, 8
          %s152 = scalar_lea.vmem %s0, %s151
        $region28: #{adaptive_gcn.1} parent=23 // pred_fallthru
          _
      $region24: #{adaptive_gcn.1} parent=5 // pred_fallthru
        _
      %p153 = scmp.le.s32.totalorder 1, %s12
      %p154 = scmp.lt.s32.totalorder %s12, 3
      %p155 = pnand %p153, %p154
      %p156 = pneg %p155
      // Predicated region
      $region29: #{adaptive_gcn.1} parent=5 // pred_check
        _
      $region30: #{adaptive_gcn.1} parent=5 // pred_check_branch
        %158 = sbr.rel (%p155) target = $region32
      $region31: #{adaptive_gcn.1} parent=5 // pred_region
        %s159 = ssub.s32 %s12, 1
        %p160 = scmp.lt.s32.totalorder %s21, 1
        %s161 = scalar_select %p160, %s21, 1
        %s162 = smul.addr %s161, 2
        %s163 = smul.addr %s162, 8
        %s164 = scalar_lea.vmem %s0, %s163
        %p165 = pneg %p50
        %p166 = pneg %p47
        %p167 = pneg %p71
        %p168 = pneg %p68
        %p169 = pneg %p92
        %p170 = pneg %p89
        %p171 = pneg %p120
        %p172 = pneg %p117
        %s173 = sand.u32 %s107, 1
        %s174 = scalar_lea.sflag [#allocation5], %s173
        %s175 = sand.u32 %s107, 1
        %s176 = smul.addr %s175, 16
        %s177 = scalar_lea.vmem [#allocation4], %s176
        %p178 = scmp.lt.s32.totalorder %s21, 1
        %s179 = scalar_select %p178, %s21, 1
        %s180 = smul.addr %s179, 2
        %s181 = smul.addr %s180, 8
        %s182 = scalar_lea.vmem %s0, %s181
        %s183 = smul.u32 2, %s22
        %p184 = scmp.eq.s32.totalorder %s22, 0
        // Predicated region
        $region33: #{adaptive_gcn.1} parent=31 // pred_check
          %p185 = pneg %p184
        $region34: #{adaptive_gcn.1} parent=31 // pred_check_branch
          %187 = sbr.rel (%p185) target = $region36
        $region35: #{adaptive_gcn.1} parent=31 // pred_region
          %v188 = vld [vmem:[%s182] sm:$0xff]
          %v189 = vld [vmem:[%s182 + $0x8] sm:$0xff]
          %v190 = vld [vmem:[%s1] sm:$0xff]
          %v191 = vld [vmem:[%s1 + $0x8] sm:$0xff]
          %v192 = vld [vmem:[%s1 + $0x10] sm:$0xff]
          %v193 = vld [vmem:[%s1 + $0x18] sm:$0xff]
          %v194 = vld [vmem:[%s1 + $0x20] sm:$0xff]
          %v195 = vld [vmem:[%s1 + $0x28] sm:$0xff]
          %v196 = vld [vmem:[%s1 + $0x30] sm:$0xff]
          %v197 = vld [vmem:[%s1 + $0x38] sm:$0xff]
          %vm198 = vcmask 261120
          %v200 = vsel %vm198, %v188, 0
          %v203 = vsel %vm198, %v189, 0
          %205 = vmatprep.subr.mxu0 0.0
          %206 = vmatpush1.msra.mxu0 0.0
          %207 = vmatprep.subr.mxu0 0.0
          %208 = vmatpush1.msra.mxu0 0.0
          %209 = vmatprep.subr.mxu0 0.0
          %210 = vmatpush1.msra.mxu0 0.0
          %211 = vmatprep.subr.mxu0 0.0
          %212 = vmatpush1.msra.mxu0 0.0
          %213 = vmatprep.subr.mxu0 0.0
          %214 = vmatpush1.msra.mxu0 0.0
          %215 = vmatprep.subr.mxu0 0.0
          %216 = vmatpush1.msra.mxu0 0.0
          %217 = vmatprep.subr.mxu0 0.0
          %218 = vmatpush1.msra.mxu0 0.0
          %219 = vmatprep.subr.mxu0 0.0
          %220 = vmatpush1.msra.mxu0 0.0
          %221 = vmatprep.subr.mxu0 0.0
          %222 = vmatpush1.msra.mxu0 0.0
          %223 = vmatprep.subr.mxu0 0.0
          %224 = vmatpush1.msra.mxu0 0.0
          %225 = vmatprep.subr.mxu0 0.0
          %226 = vmatpush1.msra.mxu0 0.0
          %227 = vmatprep.subr.mxu0 0.0
          %228 = vmatpush1.msra.mxu0 0.0
          %229 = vmatprep.subr.mxu0 0.0
          %230 = vmatpush1.msra.mxu0 %v193
          %231 = vmatprep.subr.mxu0 0.0
          %232 = vmatpush1.msra.mxu0 %v192
          %233 = vmatprep.subr.mxu0 0.0
          %234 = vmatpush1.msra.mxu0 %v191
          %235 = vmatprep.subr.mxu0 0.0
          %236 = vmatpush1.msra.mxu0 %v190
          %237 = vmatprep.subr.mxu0 0.0
          %238 = vmatpush2.msra.mxu0 0.0
          %239 = vmatprep.subr.mxu0 0.0
          %240 = vmatpush2.msra.mxu0 0.0
          %241 = vmatprep.subr.mxu0 0.0
          %242 = vmatpush2.msra.mxu0 0.0
          %243 = vmatprep.subr.mxu0 0.0
          %244 = vmatpush2.msra.mxu0 0.0
          %245 = vmatprep.subr.mxu0 0.0
          %246 = vmatpush2.msra.mxu0 0.0
          %247 = vmatprep.subr.mxu0 0.0
          %248 = vmatpush2.msra.mxu0 0.0
          %249 = vmatprep.subr.mxu0 0.0
          %250 = vmatpush2.msra.mxu0 0.0
          %251 = vmatprep.subr.mxu0 0.0
          %252 = vmatpush2.msra.mxu0 0.0
          %253 = vmatprep.subr.mxu0 0.0
          %254 = vmatpush2.msra.mxu0 0.0
          %255 = vmatprep.subr.mxu0 0.0
          %256 = vmatpush2.msra.mxu0 0.0
          %257 = vmatprep.subr.mxu0 0.0
          %258 = vmatpush2.msra.mxu0 0.0
          %259 = vmatprep.subr.mxu0 0.0
          %260 = vmatpush2.msra.mxu0 0.0
          %261 = vmatprep.subr.mxu0 0.0
          %262 = vmatpush2.msra.mxu0 0.0
          %263 = vmatprep.subr.mxu0 0.0
          %264 = vmatpush2.msra.mxu0 0.0
          %265 = vmatprep.subr.mxu0 0.0
          %266 = vmatpush2.msra.mxu0 0.0
          %267 = vmatprep.subr.mxu0 0.0
          %268 = vmatpush2.msra.mxu0 0.0
          %269 = vmatprep.mubr.f32.mxu0 0.0
          %270 = vmatmul.mubr.f32.gmra.mxu0 %v200
          %v271 = vpop.f32.mrf.mxu0
          %v272 = vadd.f32 0.0, %v271
          %v273 = vpop.f32.mrf.mxu0
          %274 = vmatprep.mubr.f32.mxu0 0.0
          %275 = vmatmul.mubr.f32.gmra.mxu0 %v203
          %v276 = vpop.f32.mrf.mxu0
          %v277 = vadd.f32 0.0, %v276
          %v278 = vpop.f32.mrf.mxu0
          %279 = vdwg.mxu0
          %280 = vst.msk [vmem:[#allocation2] sm:$0xff] %vm198, %v272
          %281 = vst.msk [vmem:[#allocation2 + $0x8] sm:$0xff] %vm198, %v277
          %282 = vmatprep.subr.mxu0 0.0
          %283 = vmatpush1.msra.mxu0 0.0
          %284 = vmatprep.subr.mxu0 0.0
          %285 = vmatpush1.msra.mxu0 0.0
          %286 = vmatprep.subr.mxu0 0.0
          %287 = vmatpush1.msra.mxu0 0.0
          %288 = vmatprep.subr.mxu0 0.0
          %289 = vmatpush1.msra.mxu0 0.0
          %290 = vmatprep.subr.mxu0 0.0
          %291 = vmatpush1.msra.mxu0 0.0
          %292 = vmatprep.subr.mxu0 0.0
          %293 = vmatpush1.msra.mxu0 0.0
          %294 = vmatprep.subr.mxu0 0.0
          %295 = vmatpush1.msra.mxu0 0.0
          %296 = vmatprep.subr.mxu0 0.0
          %297 = vmatpush1.msra.mxu0 0.0
          %298 = vmatprep.subr.mxu0 0.0
          %299 = vmatpush1.msra.mxu0 0.0
          %300 = vmatprep.subr.mxu0 0.0
          %301 = vmatpush1.msra.mxu0 0.0
          %302 = vmatprep.subr.mxu0 0.0
          %303 = vmatpush1.msra.mxu0 0.0
          %304 = vmatprep.subr.mxu0 0.0
          %305 = vmatpush1.msra.mxu0 0.0
          %306 = vmatprep.subr.mxu0 0.0
          %307 = vmatpush1.msra.mxu0 %v197
          %308 = vmatprep.subr.mxu0 0.0
          %309 = vmatpush1.msra.mxu0 %v196
          %310 = vmatprep.subr.mxu0 0.0
          %311 = vmatpush1.msra.mxu0 %v195
          %312 = vmatprep.subr.mxu0 0.0
          %313 = vmatpush1.msra.mxu0 %v194
          %314 = vmatprep.subr.mxu0 0.0
          %315 = vmatpush2.msra.mxu0 0.0
          %316 = vmatprep.subr.mxu0 0.0
          %317 = vmatpush2.msra.mxu0 0.0
          %318 = vmatprep.subr.mxu0 0.0
          %319 = vmatpush2.msra.mxu0 0.0
          %320 = vmatprep.subr.mxu0 0.0
          %321 = vmatpush2.msra.mxu0 0.0
          %322 = vmatprep.subr.mxu0 0.0
          %323 = vmatpush2.msra.mxu0 0.0
          %324 = vmatprep.subr.mxu0 0.0
          %325 = vmatpush2.msra.mxu0 0.0
          %326 = vmatprep.subr.mxu0 0.0
          %327 = vmatpush2.msra.mxu0 0.0
          %328 = vmatprep.subr.mxu0 0.0
          %329 = vmatpush2.msra.mxu0 0.0
          %330 = vmatprep.subr.mxu0 0.0
          %331 = vmatpush2.msra.mxu0 0.0
          %332 = vmatprep.subr.mxu0 0.0
          %333 = vmatpush2.msra.mxu0 0.0
          %334 = vmatprep.subr.mxu0 0.0
          %335 = vmatpush2.msra.mxu0 0.0
          %336 = vmatprep.subr.mxu0 0.0
          %337 = vmatpush2.msra.mxu0 0.0
          %338 = vmatprep.subr.mxu0 0.0
          %339 = vmatpush2.msra.mxu0 0.0
          %340 = vmatprep.subr.mxu0 0.0
          %341 = vmatpush2.msra.mxu0 0.0
          %342 = vmatprep.subr.mxu0 0.0
          %343 = vmatpush2.msra.mxu0 0.0
          %344 = vmatprep.subr.mxu0 0.0
          %345 = vmatpush2.msra.mxu0 0.0
          %346 = vmatprep.mubr.f32.mxu0 0.0
          %347 = vmatmul.mubr.f32.gmra.mxu0 %v200
          %v348 = vpop.f32.mrf.mxu0
          %v349 = vadd.f32 0.0, %v348
          %v350 = vpop.f32.mrf.mxu0
          %351 = vmatprep.mubr.f32.mxu0 0.0
          %352 = vmatmul.mubr.f32.gmra.mxu0 %v203
          %v353 = vpop.f32.mrf.mxu0
          %v354 = vadd.f32 0.0, %v353
          %v355 = vpop.f32.mrf.mxu0
          %356 = vdwg.mxu0
          %357 = vst.msk [vmem:[#allocation3] sm:$0xff] %vm198, %v349
          %358 = vst.msk [vmem:[#allocation3 + $0x8] sm:$0xff] %vm198, %v354
        $region36: #{adaptive_gcn.1} parent=31 // pred_fallthru
          _
        %s359 = smul.u32 %s22, 16
        %v360 = vld [vmem:[#allocation2] sm:$0xff]
        %v361 = vld [vmem:[#allocation2 + $0x8] sm:$0xff]
        %s362 = scalar_lea.vmem [#allocation2], %s359
        %v363 = vld [vmem:[%s362] sm:$0xff]
        %v364 = vld [vmem:[%s362 + $0x8] sm:$0xff]
        %s365 = scalar_lea.vmem [#allocation3], %s359
        %v366 = vld [vmem:[%s365] sm:$0xff]
        %v367 = vld [vmem:[%s365 + $0x8] sm:$0xff]
        %v368 = vsub.f32 %v366, %v363
        %v369 = vsub.f32 %v367, %v364
        %v370 = vld [vmem:[%s2] sm:$0x1]
        %v372 = vlaneseq
        %v373 = vshrl.u32 %v372, 7
        %v374 = vsub.s32 0, %v373
        %v375 = vrot.slane %v370, %v374
        %v377 = vadd.f32 %v368, %v375
        %v378 = vadd.f32 %v369, %v375
        %v381 = vcombine.high %v377, %v377
        %v383 = vunpack.c.l.s4 1966171168
        %v384 = vunpack.c.0.s8 %v383
        %v385 = vlaneseq
        %v386 = vshrl.u32 %v385, 7
        %v387 = vsub.s32 %v384, %v386
        %v388 = vrot.slane %v377, %v387
        %v390 = vunpack.c.l.s4 1966171168
        %v391 = vunpack.c.0.s8 %v390
        %v392 = vlaneseq
        %v393 = vshrl.u32 %v392, 7
        %v394 = vsub.s32 %v391, %v393
        %v395 = vrot.slane %v381, %v394
        %v396 = vcombine.high %v388, %v388
        %v397 = vcombine.high %v395, %v395
        %v399 = vunpack.c.l.s4 1966171168
        %v400 = vunpack.c.0.s8 %v399
        %v401 = vlaneseq
        %v402 = vshrl.u32 %v401, 7
        %v403 = vsub.s32 %v400, %v402
        %v404 = vrot.slane %v388, %v403
        %v406 = vunpack.c.l.s4 1966171168
        %v407 = vunpack.c.0.s8 %v406
        %v408 = vlaneseq
        %v409 = vshrl.u32 %v408, 7
        %v410 = vsub.s32 %v407, %v409
        %v411 = vrot.slane %v395, %v410
        %v413 = vunpack.c.l.s4 1966171168
        %v414 = vunpack.c.0.s8 %v413
        %v415 = vlaneseq
        %v416 = vshrl.u32 %v415, 7
        %v417 = vsub.s32 %v414, %v416
        %v418 = vrot.slane %v396, %v417
        %v420 = vunpack.c.l.s4 1966171168
        %v421 = vunpack.c.0.s8 %v420
        %v422 = vlaneseq
        %v423 = vshrl.u32 %v422, 7
        %v424 = vsub.s32 %v421, %v423
        %v425 = vrot.slane %v397, %v424
        %v426 = vcombine.high %v404, %v404
        %v427 = vcombine.high %v411, %v411
        %v428 = vcombine.high %v418, %v418
        %v429 = vcombine.high %v425, %v425
        %v430 = vcombine.high %v378, %v378
        %v432 = vunpack.c.l.s4 1966171168
        %v433 = vunpack.c.0.s8 %v432
        %v434 = vlaneseq
        %v435 = vshrl.u32 %v434, 7
        %v436 = vsub.s32 %v433, %v435
        %v437 = vrot.slane %v378, %v436
        %v439 = vunpack.c.l.s4 1966171168
        %v440 = vunpack.c.0.s8 %v439
        %v441 = vlaneseq
        %v442 = vshrl.u32 %v441, 7
        %v443 = vsub.s32 %v440, %v442
        %v444 = vrot.slane %v430, %v443
        %v445 = vcombine.high %v437, %v437
        %v446 = vcombine.high %v444, %v444
        %v448 = vunpack.c.l.s4 1966171168
        %v449 = vunpack.c.0.s8 %v448
        %v450 = vlaneseq
        %v451 = vshrl.u32 %v450, 7
        %v452 = vsub.s32 %v449, %v451
        %v453 = vrot.slane %v437, %v452
        %v455 = vunpack.c.l.s4 1966171168
        %v456 = vunpack.c.0.s8 %v455
        %v457 = vlaneseq
        %v458 = vshrl.u32 %v457, 7
        %v459 = vsub.s32 %v456, %v458
        %v460 = vrot.slane %v444, %v459
        %v462 = vunpack.c.l.s4 1966171168
        %v463 = vunpack.c.0.s8 %v462
        %v464 = vlaneseq
        %v465 = vshrl.u32 %v464, 7
        %v466 = vsub.s32 %v463, %v465
        %v467 = vrot.slane %v445, %v466
        %v469 = vunpack.c.l.s4 1966171168
        %v470 = vunpack.c.0.s8 %v469
        %v471 = vlaneseq
        %v472 = vshrl.u32 %v471, 7
        %v473 = vsub.s32 %v470, %v472
        %v474 = vrot.slane %v446, %v473
        %v475 = vcombine.high %v453, %v453
        %v476 = vcombine.high %v460, %v460
        %v477 = vcombine.high %v467, %v467
        %v478 = vcombine.high %v474, %v474
        %v479 = vlaneseq
        %v480 = vshrl.u32 %v479, 7
        %v481 = vsub.s32 0, %v480
        %v482 = vrot.slane %v404, %v481
        %v483 = vlaneseq
        %v484 = vshrl.u32 %v483, 7
        %v485 = vsub.s32 0, %v484
        %v486 = vrot.slane %v418, %v485
        %v487 = vlaneseq
        %v488 = vshrl.u32 %v487, 7
        %v489 = vsub.s32 0, %v488
        %v490 = vrot.slane %v426, %v489
        %v491 = vlaneseq
        %v492 = vshrl.u32 %v491, 7
        %v493 = vsub.s32 0, %v492
        %v494 = vrot.slane %v428, %v493
        %v495 = vlaneseq
        %v496 = vshrl.u32 %v495, 7
        %v497 = vsub.s32 0, %v496
        %v498 = vrot.slane %v411, %v497
        %v499 = vlaneseq
        %v500 = vshrl.u32 %v499, 7
        %v501 = vsub.s32 0, %v500
        %v502 = vrot.slane %v425, %v501
        %v503 = vlaneseq
        %v504 = vshrl.u32 %v503, 7
        %v505 = vsub.s32 0, %v504
        %v506 = vrot.slane %v427, %v505
        %v507 = vlaneseq
        %v508 = vshrl.u32 %v507, 7
        %v509 = vsub.s32 0, %v508
        %v510 = vrot.slane %v429, %v509
        %v511 = vlaneseq
        %v512 = vshrl.u32 %v511, 7
        %v513 = vsub.s32 0, %v512
        %v514 = vrot.slane %v453, %v513
        %v515 = vlaneseq
        %v516 = vshrl.u32 %v515, 7
        %v517 = vsub.s32 0, %v516
        %v518 = vrot.slane %v467, %v517
        %v519 = vlaneseq
        %v520 = vshrl.u32 %v519, 7
        %v521 = vsub.s32 0, %v520
        %v522 = vrot.slane %v475, %v521
        %v523 = vlaneseq
        %v524 = vshrl.u32 %v523, 7
        %v525 = vsub.s32 0, %v524
        %v526 = vrot.slane %v477, %v525
        %v527 = vlaneseq
        %v528 = vshrl.u32 %v527, 7
        %v529 = vsub.s32 0, %v528
        %v530 = vrot.slane %v460, %v529
        %v531 = vlaneseq
        %v532 = vshrl.u32 %v531, 7
        %v533 = vsub.s32 0, %v532
        %v534 = vrot.slane %v474, %v533
        %v535 = vlaneseq
        %v536 = vshrl.u32 %v535, 7
        %v537 = vsub.s32 0, %v536
        %v538 = vrot.slane %v476, %v537
        %v539 = vlaneseq
        %v540 = vshrl.u32 %v539, 7
        %v541 = vsub.s32 0, %v540
        %v542 = vrot.slane %v478, %v541
        %v559 = vadd.f32 %v360, %v482
        %v560 = vadd.f32 %v361, %v482
        %v561 = vadd.f32 %v360, %v486
        %v562 = vadd.f32 %v361, %v486
        %v563 = vadd.f32 %v360, %v490
        %v564 = vadd.f32 %v361, %v490
        %v565 = vadd.f32 %v360, %v494
        %v566 = vadd.f32 %v361, %v494
        %v567 = vadd.f32 %v360, %v498
        %v568 = vadd.f32 %v361, %v498
        %v569 = vadd.f32 %v360, %v502
        %v570 = vadd.f32 %v361, %v502
        %v571 = vadd.f32 %v360, %v506
        %v572 = vadd.f32 %v361, %v506
        %v573 = vadd.f32 %v360, %v510
        %v574 = vadd.f32 %v361, %v510
        %v575 = vadd.f32 %v360, %v514
        %v576 = vadd.f32 %v361, %v514
        %v577 = vadd.f32 %v360, %v518
        %v578 = vadd.f32 %v361, %v518
        %v579 = vadd.f32 %v360, %v522
        %v580 = vadd.f32 %v361, %v522
        %v581 = vadd.f32 %v360, %v526
        %v582 = vadd.f32 %v361, %v526
        %v583 = vadd.f32 %v360, %v530
        %v584 = vadd.f32 %v361, %v530
        %v585 = vadd.f32 %v360, %v534
        %v586 = vadd.f32 %v361, %v534
        %v587 = vadd.f32 %v360, %v538
        %v588 = vadd.f32 %v361, %v538
        %v589 = vadd.f32 %v360, %v542
        %v590 = vadd.f32 %v361, %v542
        %v591 = vmax.f32 %v559, 0.0
        %v592 = vmax.f32 %v560, 0.0
        %v593 = vmax.f32 %v561, 0.0
        %v594 = vmax.f32 %v562, 0.0
        %v595 = vmax.f32 %v563, 0.0
        %v596 = vmax.f32 %v564, 0.0
        %v597 = vmax.f32 %v565, 0.0
        %v598 = vmax.f32 %v566, 0.0
        %v599 = vmax.f32 %v567, 0.0
        %v600 = vmax.f32 %v568, 0.0
        %v601 = vmax.f32 %v569, 0.0
        %v602 = vmax.f32 %v570, 0.0
        %v603 = vmax.f32 %v571, 0.0
        %v604 = vmax.f32 %v572, 0.0
        %v605 = vmax.f32 %v573, 0.0
        %v606 = vmax.f32 %v574, 0.0
        %v607 = vmax.f32 %v575, 0.0
        %v608 = vmax.f32 %v576, 0.0
        %v609 = vmax.f32 %v577, 0.0
        %v610 = vmax.f32 %v578, 0.0
        %v611 = vmax.f32 %v579, 0.0
        %v612 = vmax.f32 %v580, 0.0
        %v613 = vmax.f32 %v581, 0.0
        %v614 = vmax.f32 %v582, 0.0
        %v615 = vmax.f32 %v583, 0.0
        %v616 = vmax.f32 %v584, 0.0
        %v617 = vmax.f32 %v585, 0.0
        %v618 = vmax.f32 %v586, 0.0
        %v619 = vmax.f32 %v587, 0.0
        %v620 = vmax.f32 %v588, 0.0
        %v621 = vmax.f32 %v589, 0.0
        %v622 = vmax.f32 %v590, 0.0
        %vm623 = vcmask 261120
        %v624 = vsel %vm623, %v591, -inf
        %v625 = vsel %vm623, %v592, -inf
        %v626 = vmax.f32 %v624, %v625
        %v627 = vrot.slane %v626, 4
        %v628 = vmax.f32 %v626, %v627
        %v629 = vrot.slane %v628, 2
        %v630 = vmax.f32 %v628, %v629
        %v631 = vrot.slane %v630, 1
        %v632 = vmax.f32 %v630, %v631
        %v633 = vsel %vm623, %v593, -inf
        %v634 = vsel %vm623, %v594, -inf
        %v635 = vmax.f32 %v633, %v634
        %v636 = vrot.slane %v635, 4
        %v637 = vmax.f32 %v635, %v636
        %v638 = vrot.slane %v637, 2
        %v639 = vmax.f32 %v637, %v638
        %v640 = vrot.slane %v639, 1
        %v641 = vmax.f32 %v639, %v640
        %v642 = vsel %vm623, %v595, -inf
        %v643 = vsel %vm623, %v596, -inf
        %v644 = vmax.f32 %v642, %v643
        %v645 = vrot.slane %v644, 4
        %v646 = vmax.f32 %v644, %v645
        %v647 = vrot.slane %v646, 2
        %v648 = vmax.f32 %v646, %v647
        %v649 = vrot.slane %v648, 1
        %v650 = vmax.f32 %v648, %v649
        %v651 = vsel %vm623, %v597, -inf
        %v652 = vsel %vm623, %v598, -inf
        %v653 = vmax.f32 %v651, %v652
        %v654 = vrot.slane %v653, 4
        %v655 = vmax.f32 %v653, %v654
        %v656 = vrot.slane %v655, 2
        %v657 = vmax.f32 %v655, %v656
        %v658 = vrot.slane %v657, 1
        %v659 = vmax.f32 %v657, %v658
        %v660 = vsel %vm623, %v599, -inf
        %v661 = vsel %vm623, %v600, -inf
        %v662 = vmax.f32 %v660, %v661
        %v663 = vrot.slane %v662, 4
        %v664 = vmax.f32 %v662, %v663
        %v665 = vrot.slane %v664, 2
        %v666 = vmax.f32 %v664, %v665
        %v667 = vrot.slane %v666, 1
        %v668 = vmax.f32 %v666, %v667
        %v669 = vsel %vm623, %v601, -inf
        %v670 = vsel %vm623, %v602, -inf
        %v671 = vmax.f32 %v669, %v670
        %v672 = vrot.slane %v671, 4
        %v673 = vmax.f32 %v671, %v672
        %v674 = vrot.slane %v673, 2
        %v675 = vmax.f32 %v673, %v674
        %v676 = vrot.slane %v675, 1
        %v677 = vmax.f32 %v675, %v676
        %v678 = vsel %vm623, %v603, -inf
        %v679 = vsel %vm623, %v604, -inf
        %v680 = vmax.f32 %v678, %v679
        %v681 = vrot.slane %v680, 4
        %v682 = vmax.f32 %v680, %v681
        %v683 = vrot.slane %v682, 2
        %v684 = vmax.f32 %v682, %v683
        %v685 = vrot.slane %v684, 1
        %v686 = vmax.f32 %v684, %v685
        %v687 = vsel %vm623, %v605, -inf
        %v688 = vsel %vm623, %v606, -inf
        %v689 = vmax.f32 %v687, %v688
        %v690 = vrot.slane %v689, 4
        %v691 = vmax.f32 %v689, %v690
        %v692 = vrot.slane %v691, 2
        %v693 = vmax.f32 %v691, %v692
        %v694 = vrot.slane %v693, 1
        %v695 = vmax.f32 %v693, %v694
        %v696 = vsel %vm623, %v607, -inf
        %v697 = vsel %vm623, %v608, -inf
        %v698 = vmax.f32 %v696, %v697
        %v699 = vrot.slane %v698, 4
        %v700 = vmax.f32 %v698, %v699
        %v701 = vrot.slane %v700, 2
        %v702 = vmax.f32 %v700, %v701
        %v703 = vrot.slane %v702, 1
        %v704 = vmax.f32 %v702, %v703
        %v705 = vsel %vm623, %v609, -inf
        %v706 = vsel %vm623, %v610, -inf
        %v707 = vmax.f32 %v705, %v706
        %v708 = vrot.slane %v707, 4
        %v709 = vmax.f32 %v707, %v708
        %v710 = vrot.slane %v709, 2
        %v711 = vmax.f32 %v709, %v710
        %v712 = vrot.slane %v711, 1
        %v713 = vmax.f32 %v711, %v712
        %v714 = vsel %vm623, %v611, -inf
        %v715 = vsel %vm623, %v612, -inf
        %v716 = vmax.f32 %v714, %v715
        %v717 = vrot.slane %v716, 4
        %v718 = vmax.f32 %v716, %v717
        %v719 = vrot.slane %v718, 2
        %v720 = vmax.f32 %v718, %v719
        %v721 = vrot.slane %v720, 1
        %v722 = vmax.f32 %v720, %v721
        %v723 = vsel %vm623, %v613, -inf
        %v724 = vsel %vm623, %v614, -inf
        %v725 = vmax.f32 %v723, %v724
        %v726 = vrot.slane %v725, 4
        %v727 = vmax.f32 %v725, %v726
        %v728 = vrot.slane %v727, 2
        %v729 = vmax.f32 %v727, %v728
        %v730 = vrot.slane %v729, 1
        %v731 = vmax.f32 %v729, %v730
        %v732 = vsel %vm623, %v615, -inf
        %v733 = vsel %vm623, %v616, -inf
        %v734 = vmax.f32 %v732, %v733
        %v735 = vrot.slane %v734, 4
        %v736 = vmax.f32 %v734, %v735
        %v737 = vrot.slane %v736, 2
        %v738 = vmax.f32 %v736, %v737
        %v739 = vrot.slane %v738, 1
        %v740 = vmax.f32 %v738, %v739
        %v741 = vsel %vm623, %v617, -inf
        %v742 = vsel %vm623, %v618, -inf
        %v743 = vmax.f32 %v741, %v742
        %v744 = vrot.slane %v743, 4
        %v745 = vmax.f32 %v743, %v744
        %v746 = vrot.slane %v745, 2
        %v747 = vmax.f32 %v745, %v746
        %v748 = vrot.slane %v747, 1
        %v749 = vmax.f32 %v747, %v748
        %v750 = vsel %vm623, %v619, -inf
        %v751 = vsel %vm623, %v620, -inf
        %v752 = vmax.f32 %v750, %v751
        %v753 = vrot.slane %v752, 4
        %v754 = vmax.f32 %v752, %v753
        %v755 = vrot.slane %v754, 2
        %v756 = vmax.f32 %v754, %v755
        %v757 = vrot.slane %v756, 1
        %v758 = vmax.f32 %v756, %v757
        %v759 = vsel %vm623, %v621, -inf
        %v760 = vsel %vm623, %v622, -inf
        %v761 = vmax.f32 %v759, %v760
        %v762 = vrot.slane %v761, 4
        %v763 = vmax.f32 %v761, %v762
        %v764 = vrot.slane %v763, 2
        %v765 = vmax.f32 %v763, %v764
        %v766 = vrot.slane %v765, 1
        %v767 = vmax.f32 %v765, %v766
        %vm784 = vcmask 1041409
        %v785 = vsel %vm784, %v641, %v632
        %vm786 = vcmask 1042434
        %v787 = vsel %vm786, %v650, %v785
        %vm788 = vcmask 1043459
        %v789 = vsel %vm788, %v659, %v787
        %vm790 = vcmask 1044484
        %v791 = vsel %vm790, %v668, %v789
        %vm792 = vcmask 1045509
        %v793 = vsel %vm792, %v677, %v791
        %vm794 = vcmask 1046534
        %v795 = vsel %vm794, %v686, %v793
        %vm796 = vcmask 1047559
        %v797 = vsel %vm796, %v695, %v795
        %v798 = vsel %vm784, %v713, %v704
        %v799 = vsel %vm786, %v722, %v798
        %v800 = vsel %vm788, %v731, %v799
        %v801 = vsel %vm790, %v740, %v800
        %v802 = vsel %vm792, %v749, %v801
        %v803 = vsel %vm794, %v758, %v802
        %v804 = vsel %vm796, %v767, %v803
        %807 = vst.msk [vmem:[%s177] sm:$0xff] %vm623, %v797
        %808 = vst.msk [vmem:[%s177 + $0x8] sm:$0xff] %vm623, %v804
        %s809 = sand.u32 %s107, 1
        %s810 = scalar_lea.sflag [#allocation5], %s809
        %s811 = sand.u32 %s107, 1
        %s812 = smul.addr %s811, 16
        %s813 = scalar_lea.vmem [#allocation4], %s812
        // Predicated region
        $region37: #{adaptive_gcn.1} parent=31 // pred_check
          %p814 = pneg %p117
        $region38: #{adaptive_gcn.1} parent=31 // pred_check_branch
          %816 = sbr.rel (%p814) target = $region40
        $region39: #{adaptive_gcn.1} parent=31 // pred_region
          %s817 = smul.u32 2, %s22
          %s819 = ssub.s32 256, 256
          %820 = vsyncadd %s810, %s819
          %s821 = smul.addr %s21, 2
          %s822 = sadd.s32 %s817, %s821
          %s823 = smul.addr %s822, 128
          %s824 = scalar_lea.hbm %s3, %s823
          %s825 = sshll.u32 %s813, 4
          %s826 = int_to_ptr.vmem [resolvable:$true] %s825
          %831 = dma.vmem_to_hbm [thread:$0]  %s826, 256, %s824, %s810, 128, 128, 8
        $region40: #{adaptive_gcn.1} parent=31 // pred_fallthru
          _
      $region32: #{adaptive_gcn.1} parent=5 // pred_fallthru
        _
      %p832 = scmp.le.s32.totalorder 2, %s12
      // Predicated region
      $region41: #{adaptive_gcn.1} parent=5 // pred_check
        %p833 = pneg %p832
      $region42: #{adaptive_gcn.1} parent=5 // pred_check_branch
        %835 = sbr.rel (%p833) target = $region44
      $region43: #{adaptive_gcn.1} parent=5 // pred_region
        %s836 = ssub.s32 %s12, 2
        // Predicated region
        $region45: #{adaptive_gcn.1} parent=43 // pred_check
          %p837 = pneg %p123
        $region46: #{adaptive_gcn.1} parent=43 // pred_check_branch
          %839 = sbr.rel (%p837) target = $region48
        $region47: #{adaptive_gcn.1} parent=43 // pred_region
          %s840 = sand.u32 %s108, 1
          %s841 = scalar_lea.sflag [#allocation5], %s840
          %s842 = sand.u32 %s108, 1
          %s843 = smul.addr %s842, 16
          %s844 = scalar_lea.vmem [#allocation4], %s843
          %845 = dma.done %s841, 256
        $region48: #{adaptive_gcn.1} parent=43 // pred_fallthru
          _
      $region44: #{adaptive_gcn.1} parent=5 // pred_fallthru
        _
    $region6: #{adaptive_gcn.1} parent=1 // loop_footer
      %s16 = sadd.s32 1, %s12
    $region7: #{adaptive_gcn.1} parent=1 // loop_footer_branch
      %11 = sbr.rel target = $region3
    $region8: #{adaptive_gcn.1} parent=1 // loop_exit
      _
    %846 = vsyncpa [#allocation5], 1
    %s847 = scalar_lea.sflag [#allocation5], 1
    %848 = vsyncpa %s847, 1

</llo_original>
